<compile_context>
chip_gen: v5e
topology: v5e:2x2
jax: 0.10.0
libtpu: 0.0.40
codegen_flags: <defaults>
</compile_context>

<pallas_src>
import functools

import numpy as np
import jax
import jax.numpy as jnp
from jax.experimental import pallas as pl
from jax.experimental.pallas import tpu as pltpu

EPS = 1e-5


# ----------------------------------------------------------------------------
# Pallas MXU matmul: bf16 operands, f32 accumulation, lane-dense output.
# K and N are kept whole (K <= 64, N <= 1024 in this model) so no K-loop /
# accumulator scratch is needed; M (pixel count) is tiled when large.
# ----------------------------------------------------------------------------
def _matmul_kernel(a_ref, b_ref, o_ref):
    o_ref[...] = jnp.dot(a_ref[...], b_ref[...],
                         preferred_element_type=jnp.float32)


def pallas_matmul(a, b, *, tm_max=512):
    """a: (M, K), b: (K, N)  ->  (M, N) float32 (bf16 inputs to the MXU)."""
    M, K = a.shape
    K2, N = b.shape
    assert K == K2
    a16 = a.astype(jnp.bfloat16)
    b16 = b.astype(jnp.bfloat16)
    tm = tm_max if (M > tm_max and M % tm_max == 0) else M
    cost = pl.CostEstimate(flops=2 * M * K * N, transcendentals=0,
                           bytes_accessed=2 * (M * K + K * N) + 4 * M * N)
    return pl.pallas_call(
        _matmul_kernel,
        out_shape=jax.ShapeDtypeStruct((M, N), jnp.float32),
        grid=(M // tm,),
        in_specs=[
            pl.BlockSpec((tm, K), lambda i: (i, 0)),
            pl.BlockSpec((K, N), lambda i: (0, 0)),
        ],
        out_specs=pl.BlockSpec((tm, N), lambda i: (i, 0)),
        compiler_params=pltpu.CompilerParams(
            dimension_semantics=("parallel",)),
        cost_estimate=cost,
    )(a16, b16)


# ----------------------------------------------------------------------------
# Pallas fused scale/shift + activation kernel (BatchNorm affine + ReLU/Tanh),
# applied to a lane-dense (rows, cols) slab with per-column scale/shift.
# ----------------------------------------------------------------------------
def _scale_shift_act_kernel(x_ref, s_ref, t_ref, o_ref, *, act):
    y = x_ref[...] * s_ref[...] + t_ref[...]
    if act == "relu":
        y = jnp.maximum(y, 0.0)
    elif act == "tanh":
        y = jnp.tanh(y)
    o_ref[...] = y


def pallas_scale_shift_act(x, scale, shift, act, *, tm_max=512):
    R, C = x.shape
    tm = tm_max if (R > tm_max and R % tm_max == 0) else R
    kernel = functools.partial(_scale_shift_act_kernel, act=act)
    return pl.pallas_call(
        kernel,
        out_shape=jax.ShapeDtypeStruct((R, C), jnp.float32),
        grid=(R // tm,),
        in_specs=[
            pl.BlockSpec((tm, C), lambda i: (i, 0)),
            pl.BlockSpec((1, C), lambda i: (0, 0)),
            pl.BlockSpec((1, C), lambda i: (0, 0)),
        ],
        out_specs=pl.BlockSpec((tm, C), lambda i: (i, 0)),
        compiler_params=pltpu.CompilerParams(
            dimension_semantics=("parallel",)),
    )(x.astype(jnp.float32),
      scale.reshape(1, C).astype(jnp.float32),
      shift.reshape(1, C).astype(jnp.float32))


# ----------------------------------------------------------------------------
# ConvTranspose2d(k=4, s=2, p=1)  =  one Pallas matmul + parity overlap-add.
#   out[n, 2*iy-1+ky, 2*ix-1+kx, co] += x[n, iy, ix, ci] * w[ci, co, ky, kx]
# Even output rows take (ky=1, iy=m) + (ky=3, iy=m-1); odd rows take
# (ky=2, iy=m) + (ky=0, iy=m+1); same decomposition along columns.
# ----------------------------------------------------------------------------
def conv_transpose_4x4_s2_p1(x_nhwc, w_mat):
    """x_nhwc: (N,H,W,Cin); w_mat: (Cin, 16*Cout) with columns ordered
    (ky, kx, co).  Returns (N, 2H, 2W, Cout) float32, no bias."""
    N, H, W, Cin = x_nhwc.shape
    Cout = w_mat.shape[1] // 16

    flat = pallas_matmul(x_nhwc.reshape(N * H * W, Cin), w_mat)
    P = flat.reshape(N, H, W, 4, 4, Cout)          # (n, iy, ix, ky, kx, co)

    # --- rows: interleave even/odd output rows ---
    zr = jnp.zeros((N, 1, W, 4, Cout), jnp.float32)
    E = P[:, :, :, 1] + jnp.concatenate([zr, P[:, :-1, :, 3]], axis=1)
    O = P[:, :, :, 2] + jnp.concatenate([P[:, 1:, :, 0], zr], axis=1)
    rows = jnp.stack([E, O], axis=2).reshape(N, 2 * H, W, 4, Cout)

    # --- columns: interleave even/odd output columns ---
    zc = jnp.zeros((N, 2 * H, 1, Cout), jnp.float32)
    Ec = rows[:, :, :, 1] + jnp.concatenate([zc, rows[:, :, :-1, 3]], axis=2)
    Oc = rows[:, :, :, 2] + jnp.concatenate([rows[:, :, 1:, 0], zc], axis=2)
    return jnp.stack([Ec, Oc], axis=3).reshape(N, 2 * H, 2 * W, Cout)


# ----------------------------------------------------------------------------
# Training-mode BatchNorm2d + activation (fused Pallas elementwise kernel).
# Stats are computed over the real (unpadded) activation; the conv bias of a
# BN-followed layer cancels exactly, so it is not applied.
# ----------------------------------------------------------------------------
def batchnorm_act_nhwc(y, gamma, beta, act):
    N, H, W, C = y.shape
    flat = y.reshape(N * H * W, C)
    mean = jnp.mean(flat, axis=0)
    var = jnp.var(flat, axis=0)                    # biased, like PyTorch norm
    scale = gamma / jnp.sqrt(var + EPS)
    shift = beta - mean * scale
    slab = y.reshape(N * H, W * C)                 # lane-dense (>=128 lanes)
    out = pallas_scale_shift_act(slab, jnp.tile(scale, W), jnp.tile(shift, W), act)
    return out.reshape(N, H, W, C)


# ----------------------------------------------------------------------------
# Parameters: PyTorch-layout init (deterministic, synthetic) + one-time
# layout preparation (transpose / reshape / bf16-cast done once, not per call).
# ----------------------------------------------------------------------------
def init_params(key, noise_dim, embed_dim, img_channels, feature_dim):
    F = feature_dim
    keys = jax.random.split(key, 20)
    p = {}
    fc_out = F * 8 * 4 * 4
    p["fc_w"] = jax.random.normal(keys[0], (fc_out, noise_dim + embed_dim),
                                  jnp.float32) * 0.05
    p["fc_b"] = jax.random.normal(keys[1], (fc_out,), jnp.float32) * 0.05
    p["fc_gamma"] = 1.0 + 0.1 * jax.random.normal(keys[2], (fc_out,), jnp.float32)
    p["fc_beta"] = 0.1 * jax.random.normal(keys[3], (fc_out,), jnp.float32)

    chans = [F * 8, F * 4, F * 2, F, img_channels]
    for i in range(4):
        cin, cout = chans[i], chans[i + 1]
        p[f"w{i}"] = jax.random.normal(keys[4 + 4 * i], (cin, cout, 4, 4),
                                       jnp.float32) * 0.05
        p[f"b{i}"] = jax.random.normal(keys[5 + 4 * i], (cout,), jnp.float32) * 0.05
        if i < 3:
            p[f"gamma{i}"] = 1.0 + 0.1 * jax.random.normal(
                keys[6 + 4 * i], (cout,), jnp.float32)
            p[f"beta{i}"] = 0.1 * jax.random.normal(
                keys[7 + 4 * i], (cout,), jnp.float32)
    return p


def prepare_params(p):
    """One-time relayout: fc weight -> (in, out), conv weights ->
    (Cin, 16*Cout) with (ky, kx, co) column order, everything bf16-cast once.
    Biases of BN-followed layers are dropped (they cancel in training-mode BN)."""
    q = {
        "fc_w": p["fc_w"].T.astype(jnp.bfloat16),
        "fc_gamma": p["fc_gamma"], "fc_beta": p["fc_beta"],
        "b3": p["b3"],
    }
    for i in range(4):
        w = p[f"w{i}"]                                       # (Cin, Cout, 4, 4)
        cin, cout = w.shape[0], w.shape[1]
        q[f"w{i}"] = jnp.transpose(w, (0, 2, 3, 1)).reshape(
            cin, 16 * cout).astype(jnp.bfloat16)
        if i < 3:
            q[f"gamma{i}"] = p[f"gamma{i}"]
            q[f"beta{i}"] = p[f"beta{i}"]
    return q


# ----------------------------------------------------------------------------
# Forward pass (matches PyTorch Generator.forward with training-mode BN).
# ----------------------------------------------------------------------------
@jax.jit
def generator_forward(params, noise, embed):
    B = noise.shape[0]
    c0 = params["fc_w"].shape[1] // 16               # = feature_dim * 8

    # ---- fc: Linear -> BatchNorm1d (batch stats) -> ReLU ----
    x = jnp.concatenate([noise, embed], axis=1)      # (B, nd+ed)
    lin = pallas_matmul(x, params["fc_w"])           # (B, F*8*16) f32
    mean = jnp.mean(lin, axis=0)
    var = jnp.var(lin, axis=0)
    scale = params["fc_gamma"] / jnp.sqrt(var + EPS)
    shift = params["fc_beta"] - mean * scale         # fc bias cancels in BN
    h = pallas_scale_shift_act(lin, scale, shift, "relu")

    # view(B, F*8, 4, 4) in NCHW, converted to NHWC for the conv stack
    h = h.reshape(B, c0, 4, 4).transpose(0, 2, 3, 1)

    # ---- 3x [ConvTranspose -> BatchNorm2d -> ReLU] ----
    for i in range(3):
        y = conv_transpose_4x4_s2_p1(h, params[f"w{i}"])
        h = batchnorm_act_nhwc(y, params[f"gamma{i}"], params[f"beta{i}"], "relu")

    # ---- last ConvTranspose -> bias -> Tanh (no BN) ----
    y = conv_transpose_4x4_s2_p1(h, params["w3"])
    N, OH, OW, C = y.shape
    slab = y.reshape(N * OH, OW * C)                 # lane-dense (OW*C lanes)
    out = pallas_scale_shift_act(slab, jnp.ones((OW * C,), jnp.float32),
                                 jnp.tile(params["b3"], OW), "tanh")
    return out.reshape(N, OH, OW, C).transpose(0, 3, 1, 2)   # NCHW


# ----------------------------------------------------------------------------
# Self-test of the transposed-conv decomposition against a direct reference.
# ----------------------------------------------------------------------------
def _conv_transpose_ref_numpy(x_nhwc, w_t):
    """ConvTranspose2d(4, 2, 1) straight from the definition (no bias)."""
    N, H, W, Cin = x_nhwc.shape
    Cout = w_t.shape[1]
    out = np.zeros((N, 2 * H, 2 * W, Cout), np.float32)
    for iy in range(H):
        for ix in range(W):
            for ky in range(4):
                for kx in range(4):
                    oy, ox = 2 * iy - 1 + ky, 2 * ix - 1 + kx
                    if 0 <= oy < 2 * H and 0 <= ox < 2 * W:
                        out[:, oy, ox, :] += x_nhwc[:, iy, ix, :] @ w_t[:, :, ky, kx]
    return out


def _self_test_conv_transpose():
    rng = np.random.RandomState(0)
    N, H, W, Cin, Cout = 2, 4, 4, 8, 3
    # Quantize inputs to bf16-representable values so the only difference vs
    # the f32 numpy reference is accumulation order (~1e-6).
    x = jnp.asarray(rng.randn(N, H, W, Cin).astype(np.float32))
    x = x.astype(jnp.bfloat16).astype(jnp.float32)
    w = jnp.asarray(rng.randn(Cin, Cout, 4, 4).astype(np.float32))
    w = w.astype(jnp.bfloat16).astype(jnp.float32)
    w_mat = jnp.transpose(w, (0, 2, 3, 1)).reshape(Cin, 16 * Cout)
    got = np.asarray(conv_transpose_4x4_s2_p1(x, w_mat))
    ref = _conv_transpose_ref_numpy(np.asarray(x), np.asarray(w))
    np.testing.assert_allclose(got, ref, rtol=1e-3, atol=1e-3)


if __name__ == "__main__":
    _self_test_conv_transpose()

    noise_dim, embed_dim, img_channels, feature_dim = 16, 16, 3, 8
    B = 2

    key = jax.random.PRNGKey(0)
    kp, kn, ke = jax.random.split(key, 3)
    params = prepare_params(
        init_params(kp, noise_dim, embed_dim, img_channels, feature_dim))
    noise = jax.random.normal(kn, (B, noise_dim), jnp.float32)
    embed = jax.random.normal(ke, (B, embed_dim), jnp.float32)

    out = generator_forward(params, noise, embed)
    out = jax.block_until_ready(out)

    assert out.shape == (B, img_channels, 64, 64), out.shape
    assert bool(jnp.all(jnp.isfinite(out)))
    assert bool(jnp.all(jnp.abs(out) <= 1.0))
    print("KERNEL_OK")
</pallas_src>

<mosaic_0001>
module attributes {stable_mosaic.version = 11 : i64} {
  func.func @_matmul_kernel(%arg0: i32, %arg1: memref<32x8xbf16, #tpu.memory_space<vmem>>, %arg2: memref<8x48xbf16, #tpu.memory_space<vmem>>, %arg3: memref<32x48xf32, #tpu.memory_space<vmem>>) attributes {dimension_semantics = [#tpu.dimension_semantics<parallel>], iteration_bounds = array<i64: 1>, scalar_prefetch = 0 : i64, scratch_operands = 0 : i64, tpu.core_type = #tpu.core_type<tc>, window_params = [{transform_indices = @transform_0, window_bounds = array<i64: 32, 8>}, {pipeline_mode = #tpu.pipeline_mode<synchronous>, transform_indices = @transform_1, window_bounds = array<i64: 8, 48>}, {transform_indices = @transform_2, window_bounds = array<i64: 32, 48>}]} {
    %c0 = arith.constant 0 : index
    %c0_0 = arith.constant 0 : index
    %0 = vector.load %arg1[%c0, %c0_0] : memref<32x8xbf16, #tpu.memory_space<vmem>>, vector<32x8xbf16>
    %c0_1 = arith.constant 0 : index
    %c0_2 = arith.constant 0 : index
    %1 = vector.load %arg2[%c0_1, %c0_2] : memref<8x48xbf16, #tpu.memory_space<vmem>>, vector<8x48xbf16>
    %cst = arith.constant dense<0.000000e+00> : vector<32x48xf32>
    %2 = tpu.matmul %0, %1, %cst {dimension_numbers = #tpu.dot_dimension_numbers<[1], [0], [0], [1], [0, 0, 1, 1], [], []>} : vector<32x8xbf16>, vector<8x48xbf16>, vector<32x48xf32> -> vector<32x48xf32>
    %c0_3 = arith.constant 0 : index
    %c0_4 = arith.constant 0 : index
    %3 = vector.load %arg3[%c0_3, %c0_4] : memref<32x48xf32, #tpu.memory_space<vmem>>, vector<32x48xf32>
    tpu.vector_store %arg3[%c0_3, %c0_4], %2 {strides = array<i32>} : memref<32x48xf32, #tpu.memory_space<vmem>>, vector<32x48xf32>,
    return
  }
  func.func @transform_0(%arg0: i32) -> (i32, i32) {
    %c0_i32 = arith.constant 0 : i32
    %c0_i32_0 = arith.constant 0 : i32
    return %arg0, %c0_i32 : i32, i32
  }
  func.func @transform_1(%arg0: i32) -> (i32, i32) {
    %c0_i32 = arith.constant 0 : i32
    %c0_i32_0 = arith.constant 0 : i32
    %c0_i32_1 = arith.constant 0 : i32
    return %c0_i32, %c0_i32_0 : i32, i32
  }
  func.func @transform_2(%arg0: i32) -> (i32, i32) {
    %c0_i32 = arith.constant 0 : i32
    %c0_i32_0 = arith.constant 0 : i32
    return %arg0, %c0_i32 : i32, i32
  }
}

</mosaic_0001>

<llo_original>
// kernel: tpu_custom_call.1
$region0: #{tpu_custom_call.1}
  #allocation0 [shape = 'u32[]', space=smem, size = 0x4, offset = 0x4, fixed_abs, tag = 'smem constant byte address 0x4 - core index']
  #allocation1 [shape = 'u32[72,128]{1,0:T(1,128)}', space=vmem, size = 0x9000, scoped, tag = 'internal scratch']
  %s0 = inlined_call_operand.vmem [shape: bf16[32,8], index: 0, kind: input, shape index: {}]
  %s1 = inlined_call_operand.vmem [shape: bf16[8,48], index: 1, kind: input, shape index: {}]
  %s2 = inlined_call_operand.hbm [shape: f32[32,48], index: 2, kind: output, shape index: {}]
  %s3 = sld [smem:[#allocation0]]
  $region18: #{tpu_custom_call.1} parent=0
    _
  %s5 = ssub.s32 1, %s3
  %s6 = scalar_select 0, %s5, %s3
  $region1: #{tpu_custom_call.1} parent=0
    #allocation2 [shape = 'u8[16384]{0}', space=vmem, size = 0x4000, scoped, tag = 'output window, operand 0, single buffered']
    #allocation3 [shape = 's32[1]{0}', space=sflag, size = 0x4, scoped, tag = 'scoped memory for tpu_custom_call.1']
    %7 = vsyncpa [#allocation3], 0
    // Predicated region
    $region2: #{tpu_custom_call.1} parent=1 // pred_check
      _
    $region3: #{tpu_custom_call.1} parent=1 // pred_check_branch
      %9 = sbr.rel (0) target = $region5
    $region4: #{tpu_custom_call.1} parent=1 // pred_region
      _
    $region5: #{tpu_custom_call.1} parent=1 // pred_fallthru
      _
    // Predicated region
    $region6: #{tpu_custom_call.1} parent=1 // pred_check
      _
    $region7: #{tpu_custom_call.1} parent=1 // pred_check_branch
      %11 = sbr.rel (0) target = $region9
    $region8: #{tpu_custom_call.1} parent=1 // pred_region
      _
    $region9: #{tpu_custom_call.1} parent=1 // pred_fallthru
      _
    %v13 = vld [vmem:[%s0] sm:$0xf]
    %v14 = vld [vmem:[%s0 + $0x4] sm:$0xf]
    %v15 = vld [vmem:[%s0 + $0x8] sm:$0xf]
    %v16 = vld [vmem:[%s0 + $0xc] sm:$0xf]
    %v17 = vld [vmem:[%s1] sm:$0xf]
    %v22 = vunpack.c.l.b16 %v13
    %v23 = vunpack.c.l.b16 %v14
    %v24 = vunpack.c.l.b16 %v15
    %v25 = vunpack.c.l.b16 %v16
    %v26 = vpack.c.b16 %v23, %v22
    %v27 = vpack.c.b16 %v25, %v24
    %vm28 = vcmask 64512
    %v30 = vsel %vm28, %v26, 0
    %v33 = vsel %vm28, %v27, 0
    %vm35 = vcmask 1043456
    %v37 = vsel %vm35, %v17, 0
    %39 = vmatpush.bf16.msra.mxu0 0
    %40 = vmatpush.bf16.msra.mxu0 0
    %41 = vmatpush.bf16.msra.mxu0 0
    %42 = vmatpush.bf16.msra.mxu0 0
    %43 = vmatpush.bf16.msra.mxu0 0
    %44 = vmatpush.bf16.msra.mxu0 0
    %45 = vmatpush.bf16.msra.mxu0 0
    %46 = vmatpush.bf16.msra.mxu0 %v37
    %47 = vmatmul.bf16.gmra.mxu0 %v30
    %v48 = vpop.f32.mrf.mxu0
    %v49 = vadd.f32 0.0, %v48
    %v50 = vpop.f32.mrf.mxu0
    %v51 = vadd.f32 0.0, %v50
    %52 = vmatmul.bf16.gmra.mxu0 %v33
    %v53 = vpop.f32.mrf.mxu0
    %v54 = vadd.f32 0.0, %v53
    %v55 = vpop.f32.mrf.mxu0
    %v56 = vadd.f32 0.0, %v55
    %57 = vdwg.mxu0
    %vm58 = vcmask 392192
    %59 = vst.msk [vmem:[#allocation2] sm:$0xff] %vm58, %v49
    %60 = vst.msk [vmem:[#allocation2 + $0x8] sm:$0xff] %vm58, %v51
    %61 = vst.msk [vmem:[#allocation2 + $0x10] sm:$0xff] %vm58, %v54
    %62 = vst.msk [vmem:[#allocation2 + $0x18] sm:$0xff] %vm58, %v56
    // Predicated region
    $region10: #{tpu_custom_call.1} parent=1 // pred_check
      _
    $region11: #{tpu_custom_call.1} parent=1 // pred_check_branch
      %64 = sbr.rel (0) target = $region13
    $region12: #{tpu_custom_call.1} parent=1 // pred_region
      %66 = vsyncadd [#allocation3], 0
      %s67 = sshll.u32 [#allocation2], 4
      %s68 = int_to_ptr.vmem [resolvable:$true] %s67
      %s69 = sshll.u32 %s2, 4
      %s70 = int_to_ptr.hbm [resolvable:$true] %s69
      %75 = dma.vmem_to_hbm [thread:$0]  %s68, 512, %s70, [#allocation3], 128, 128, 8
    $region13: #{tpu_custom_call.1} parent=1 // pred_fallthru
      _
    // Predicated region
    $region14: #{tpu_custom_call.1} parent=1 // pred_check
      _
    $region15: #{tpu_custom_call.1} parent=1 // pred_check_branch
      %77 = sbr.rel (0) target = $region17
    $region16: #{tpu_custom_call.1} parent=1 // pred_region
      %79 = dma.done [#allocation3], 512
    $region17: #{tpu_custom_call.1} parent=1 // pred_fallthru
      _
    %80 = vsyncpa [#allocation3], 1

</llo_original>
